<compile_context>
chip_gen: v5e
topology: v5e:2x2
jax: 0.10.0
libtpu: 0.0.40
codegen_flags: <defaults>
</compile_context>

<pallas_src>
import jax
import jax.numpy as jnp
import numpy as np
from jax import lax
from jax.experimental import pallas as pl
from jax.experimental.pallas import tpu as pltpu

LANE = 128                        # pad channel-like dims to this for dense vregs
_VMEM_BUDGET = 12 * 1024 * 1024   # per-step cap; fits v5e's 16 MiB default scoped VMEM


def _round_up(n, m):
    return ((n + m - 1) // m) * m


def _pad_axis(a, axis, target):
    pad = target - a.shape[axis]
    if pad == 0:
        return a
    widths = [(0, 0)] * a.ndim
    widths[axis] = (0, pad)
    return jnp.pad(a, widths)


def _tensorcores_per_device():
    """Best-effort TensorCores per JAX device (megacore parts report 2)."""
    try:
        kind = jax.devices()[0].device_kind.lower()
    except Exception:
        return 1
    if any(tag in kind for tag in ("v2", "v3", "lite", "v5e", "v6")):
        return 1   # single-TC parts: extra "parallel" steps are pure overhead
    if any(tag in kind for tag in ("v4", "v5p", "v5", "7")):
        return 2   # megacore / dual-TC parts: shard balanced "parallel" steps
    return 1


def _pick_tiling(b2n, hw, kc_p, cout_p):
    """steps / samples-per-step: no zero-padded batch rows, balanced across
    TensorCores, per-step footprint (double-buffered patches block + f32 conv
    accumulator) kept under the VMEM budget for scale-up."""
    per_sample = hw * (2 * kc_p + cout_p) * 4
    nb_cap = max(1, _VMEM_BUDGET // per_sample)
    steps = max(min(_tensorcores_per_device(), b2n), pl.cdiv(b2n, nb_cap))
    nb = pl.cdiv(b2n, steps)
    steps = pl.cdiv(b2n, nb)
    return steps, nb


# ---------------------------------------------------------------------------
# Fused kernel: conv-as-one-matmul + bias + ReLU + global-avg-pool + MLP head.
# ---------------------------------------------------------------------------
def _simclr_fused_kernel(p_ref, wc_ref, bc_ref, w1_ref, b1_ref, w2_ref, b2_ref,
                         o_ref):
    # p_ref  : (NB, H*W, KC_P)   im2col patches, K zero-padded to 128   (VMEM)
    # wc_ref : (KC_P, COUT_P)    flattened conv weight (0-padded rows/cols)
    # bc_ref : (1, COUT_P)       conv bias (0-padded)
    # w1_ref : (COUT_P, HID_P)   head linear 1 (0-padded rows/cols)
    # b1_ref : (1, HID_P)
    # w2_ref : (HID_P, PROJ_P)   head linear 2 (0-padded rows/cols)
    # b2_ref : (1, PROJ_P)
    # o_ref  : (1, NB, PROJ_P)   projections (lane-dense, sliced in wrapper)
    nb, hw, kc_p = p_ref.shape
    cout_p = wc_ref.shape[1]

    patches = p_ref[...].reshape(nb * hw, kc_p)

    # 3x3 conv as a single MXU contraction (zero-padded K rows/cols are inert).
    acc = jnp.dot(patches, wc_ref[...], preferred_element_type=jnp.float32)
    acc = jnp.maximum(acc + bc_ref[...], 0.0)             # bias + ReLU (VPU)

    # Global average pool over the spatial axis.
    # (If profiling shows the XLU reduce binding, this can be moved onto the
    #  mostly-idle MXU as a block-diagonal 1/HW matmul.)
    pooled = acc.reshape(nb, hw, cout_p).sum(axis=1) * (1.0 / float(hw))

    # Fused contrastive head: Linear -> ReLU -> Linear.
    t = jnp.dot(pooled, w1_ref[...], preferred_element_type=jnp.float32)
    t = jnp.maximum(t + b1_ref[...], 0.0)
    z = jnp.dot(t, w2_ref[...], preferred_element_type=jnp.float32) + b2_ref[...]

    o_ref[...] = z.astype(o_ref.dtype).reshape(o_ref.shape)


# ---------------------------------------------------------------------------
# Wrapper: single-op im2col, zero-padding to lane-dense shapes, one
# pallas_call with a generation-aware batch-tiled "parallel" grid.
# ---------------------------------------------------------------------------
@jax.jit
def simclr_forward(x1, x2, params):
    conv_w, conv_b, w1, b1, w2, b2 = params
    n, cin, h, w = x1.shape
    kh, kw, _, cout = conv_w.shape
    hid = w1.shape[-1]
    proj = w2.shape[-1]
    hw = h * w
    kc = kh * kw * cin

    kc_p = _round_up(kc, LANE)
    cout_p = _round_up(cout, LANE)
    hid_p = _round_up(hid, LANE)
    proj_p = _round_up(proj, LANE)

    b2n = 2 * n
    steps, nb = _pick_tiling(b2n, hw, kc_p, cout_p)
    m2 = steps * nb

    # ---- im2col: one XLA op on the NCHW input ------------------------------
    x = jnp.concatenate([x1, x2], axis=0).astype(jnp.float32)       # (2N,Cin,H,W)
    patches = lax.conv_general_dilated_patches(
        x, (kh, kw), (1, 1), ((1, 1), (1, 1)),
        precision=lax.Precision.HIGHEST)                            # (2N,KC,H,W)
    patches = jnp.transpose(patches, (0, 2, 3, 1)).reshape(b2n, hw, kc)
    patches = _pad_axis(_pad_axis(patches, 2, kc_p), 0, m2)         # K->128, batch->m2

    # Flatten the conv weight THROUGH THE SAME patches op so its feature
    # ordering matches `patches` by construction.
    w_nchw = jnp.transpose(conv_w, (3, 2, 0, 1)).astype(jnp.float32)   # (Cout,Cin,kh,kw)
    wc = lax.conv_general_dilated_patches(
        w_nchw, (kh, kw), (1, 1), ((0, 0), (0, 0)),
        precision=lax.Precision.HIGHEST).reshape(cout, kc).T            # (KC, Cout)
    wc = _pad_axis(_pad_axis(wc, 0, kc_p), 1, cout_p)

    bc = _pad_axis(conv_b.reshape(1, cout).astype(jnp.float32), 1, cout_p)
    w1p = _pad_axis(_pad_axis(w1.astype(jnp.float32), 0, cout_p), 1, hid_p)
    b1p = _pad_axis(b1.reshape(1, hid).astype(jnp.float32), 1, hid_p)
    w2p = _pad_axis(_pad_axis(w2.astype(jnp.float32), 0, hid_p), 1, proj_p)
    b2p = _pad_axis(b2.reshape(1, proj).astype(jnp.float32), 1, proj_p)

    grid_spec = pltpu.PrefetchScalarGridSpec(
        num_scalar_prefetch=0,
        grid=(steps,),
        in_specs=[
            pl.BlockSpec((nb, hw, kc_p), lambda b: (b, 0, 0)),     # patches
            pl.BlockSpec((kc_p, cout_p), lambda b: (0, 0)),        # conv W
            pl.BlockSpec((1, cout_p), lambda b: (0, 0)),           # conv b
            pl.BlockSpec((cout_p, hid_p), lambda b: (0, 0)),       # head W1
            pl.BlockSpec((1, hid_p), lambda b: (0, 0)),            # head b1
            pl.BlockSpec((hid_p, proj_p), lambda b: (0, 0)),       # head W2
            pl.BlockSpec((1, proj_p), lambda b: (0, 0)),           # head b2
        ],
        out_specs=pl.BlockSpec((1, nb, proj_p), lambda b: (b, 0, 0)),
    )

    z = pl.pallas_call(
        _simclr_fused_kernel,
        out_shape=jax.ShapeDtypeStruct((steps, nb, proj_p), jnp.float32),
        grid_spec=grid_spec,
        compiler_params=pltpu.CompilerParams(
            dimension_semantics=("parallel",)),
    )(patches, wc, bc, w1p, b1p, w2p, b2p)

    z = z.reshape(m2, proj_p)[:b2n, :proj]   # drop batch padding and lane padding
    return z[:n], z[n:]


if __name__ == "__main__":
    # Small shapes consistent with the module's forward (PyTorch NCHW inputs).
    N, Cin, H, W = 2, 4, 16, 16
    Cout, HID, PROJ = 32, 32, 16

    key = jax.random.PRNGKey(0)
    k_x1, k_x2, k_cw, k_cb, k_w1, k_b1, k_w2, k_b2 = jax.random.split(key, 8)

    x1 = jax.random.normal(k_x1, (N, Cin, H, W), jnp.float32)
    x2 = jax.random.normal(k_x2, (N, Cin, H, W), jnp.float32)

    conv_w = jax.random.normal(k_cw, (3, 3, Cin, Cout), jnp.float32) * 0.1
    conv_b = jax.random.normal(k_cb, (Cout,), jnp.float32) * 0.01
    w1 = jax.random.normal(k_w1, (Cout, HID), jnp.float32) * 0.1
    b1 = jax.random.normal(k_b1, (HID,), jnp.float32) * 0.01
    w2 = jax.random.normal(k_w2, (HID, PROJ), jnp.float32) * 0.1
    b2 = jax.random.normal(k_b2, (PROJ,), jnp.float32) * 0.01

    params = (conv_w, conv_b, w1, b1, w2, b2)

    z1, z2 = simclr_forward(x1, x2, params)
    jax.block_until_ready((z1, z2))

    # ---- float64 NumPy reference (host) as a correctness gate --------------
    def ref_forward(x):
        xh = np.transpose(np.asarray(x, np.float64), (0, 2, 3, 1))
        xp = np.pad(xh, ((0, 0), (1, 1), (1, 1), (0, 0)))
        wf = np.asarray(conv_w, np.float64)
        acc = np.zeros((N, H, W, Cout), np.float64)
        for kh in range(3):
            for kw in range(3):
                acc += np.einsum("nhwc,cd->nhwd",
                                 xp[:, kh:kh + H, kw:kw + W, :], wf[kh, kw])
        acc = np.maximum(acc + np.asarray(conv_b, np.float64), 0.0)
        hfeat = acc.mean(axis=(1, 2))
        t = np.maximum(hfeat @ np.asarray(w1, np.float64)
                       + np.asarray(b1, np.float64), 0.0)
        return t @ np.asarray(w2, np.float64) + np.asarray(b2, np.float64)

    r1, r2 = ref_forward(x1), ref_forward(x2)
    assert z1.shape == (N, PROJ) and z2.shape == (N, PROJ)
    np.testing.assert_allclose(np.asarray(z1), r1, rtol=2e-3, atol=2e-3)
    np.testing.assert_allclose(np.asarray(z2), r2, rtol=2e-3, atol=2e-3)
    print("KERNEL_OK")
</pallas_src>

<mosaic_0001>
module attributes {stable_mosaic.version = 11 : i64} {
  func.func @_simclr_fused_kernel(%arg0: i32, %arg1: memref<4x256x128xf32, #tpu.memory_space<vmem>>, %arg2: memref<128x128xf32, #tpu.memory_space<vmem>>, %arg3: memref<1x128xf32, #tpu.memory_space<vmem>>, %arg4: memref<128x128xf32, #tpu.memory_space<vmem>>, %arg5: memref<1x128xf32, #tpu.memory_space<vmem>>, %arg6: memref<128x128xf32, #tpu.memory_space<vmem>>, %arg7: memref<1x128xf32, #tpu.memory_space<vmem>>, %arg8: memref<1x4x128xf32, #tpu.memory_space<vmem>>) attributes {dimension_semantics = [#tpu.dimension_semantics<parallel>], iteration_bounds = array<i64: 1>, scalar_prefetch = 0 : i64, scratch_operands = 0 : i64, tpu.core_type = #tpu.core_type<tc>, window_params = [{transform_indices = @transform_0, window_bounds = array<i64: 4, 256, 128>}, {pipeline_mode = #tpu.pipeline_mode<synchronous>, transform_indices = @transform_1, window_bounds = array<i64: 128, 128>}, {pipeline_mode = #tpu.pipeline_mode<synchronous>, transform_indices = @transform_2, window_bounds = array<i64: 1, 128>}, {pipeline_mode = #tpu.pipeline_mode<synchronous>, transform_indices = @transform_3, window_bounds = array<i64: 128, 128>}, {pipeline_mode = #tpu.pipeline_mode<synchronous>, transform_indices = @transform_4, window_bounds = array<i64: 1, 128>}, {pipeline_mode = #tpu.pipeline_mode<synchronous>, transform_indices = @transform_5, window_bounds = array<i64: 128, 128>}, {pipeline_mode = #tpu.pipeline_mode<synchronous>, transform_indices = @transform_6, window_bounds = array<i64: 1, 128>}, {transform_indices = @transform_7, window_bounds = array<i64: 1, 4, 128>}]} {
    %c0 = arith.constant 0 : index
    %c0_0 = arith.constant 0 : index
    %c0_1 = arith.constant 0 : index
    %0 = vector.load %arg1[%c0, %c0_0, %c0_1] : memref<4x256x128xf32, #tpu.memory_space<vmem>>, vector<4x256x128xf32>
    %1 = vector.shape_cast %0 : vector<4x256x128xf32> to vector<1024x128xf32>
    %c0_2 = arith.constant 0 : index
    %c0_3 = arith.constant 0 : index
    %2 = vector.load %arg2[%c0_2, %c0_3] : memref<128x128xf32, #tpu.memory_space<vmem>>, vector<128x128xf32>
    %cst = arith.constant dense<0.000000e+00> : vector<1024x128xf32>
    %3 = tpu.matmul %1, %2, %cst {dimension_numbers = #tpu.dot_dimension_numbers<[1], [0], [0], [1], [0, 0, 1, 1], [], []>} : vector<1024x128xf32>, vector<128x128xf32>, vector<1024x128xf32> -> vector<1024x128xf32>
    %c0_4 = arith.constant 0 : index
    %c0_5 = arith.constant 0 : index
    %4 = vector.load %arg3[%c0_4, %c0_5] : memref<1x128xf32, #tpu.memory_space<vmem>>, vector<1x128xf32>
    %5 = vector.broadcast %4 : vector<1x128xf32> to vector<1024x128xf32>
    %6 = arith.addf %3, %5 : vector<1024x128xf32>
    %cst_6 = arith.constant 0.000000e+00 : f32
    %7 = vector.broadcast %cst_6 : f32 to vector<1024x128xf32>
    %8 = arith.maximumf %6, %7 : vector<1024x128xf32>
    %9 = vector.shape_cast %8 : vector<1024x128xf32> to vector<4x256x128xf32>
    %cst_7 = arith.constant dense<0.000000e+00> : vector<4x128xf32>
    %10 = vector.multi_reduction <add>, %9, %cst_7 [1] : vector<4x256x128xf32> to vector<4x128xf32>
    %cst_8 = arith.constant 3.906250e-03 : f32
    %11 = vector.broadcast %cst_8 : f32 to vector<4x128xf32>
    %12 = arith.mulf %10, %11 : vector<4x128xf32>
    %c0_9 = arith.constant 0 : index
    %c0_10 = arith.constant 0 : index
    %13 = vector.load %arg4[%c0_9, %c0_10] : memref<128x128xf32, #tpu.memory_space<vmem>>, vector<128x128xf32>
    %cst_11 = arith.constant dense<0.000000e+00> : vector<4x128xf32>
    %14 = tpu.matmul %12, %13, %cst_11 {dimension_numbers = #tpu.dot_dimension_numbers<[1], [0], [0], [1], [0, 0, 1, 1], [], []>} : vector<4x128xf32>, vector<128x128xf32>, vector<4x128xf32> -> vector<4x128xf32>
    %c0_12 = arith.constant 0 : index
    %c0_13 = arith.constant 0 : index
    %15 = vector.load %arg5[%c0_12, %c0_13] : memref<1x128xf32, #tpu.memory_space<vmem>>, vector<1x128xf32>
    %16 = vector.broadcast %15 : vector<1x128xf32> to vector<4x128xf32>
    %17 = arith.addf %14, %16 : vector<4x128xf32>
    %cst_14 = arith.constant 0.000000e+00 : f32
    %18 = vector.broadcast %cst_14 : f32 to vector<4x128xf32>
    %19 = arith.maximumf %17, %18 : vector<4x128xf32>
    %c0_15 = arith.constant 0 : index
    %c0_16 = arith.constant 0 : index
    %20 = vector.load %arg6[%c0_15, %c0_16] : memref<128x128xf32, #tpu.memory_space<vmem>>, vector<128x128xf32>
    %cst_17 = arith.constant dense<0.000000e+00> : vector<4x128xf32>
    %21 = tpu.matmul %19, %20, %cst_17 {dimension_numbers = #tpu.dot_dimension_numbers<[1], [0], [0], [1], [0, 0, 1, 1], [], []>} : vector<4x128xf32>, vector<128x128xf32>, vector<4x128xf32> -> vector<4x128xf32>
    %c0_18 = arith.constant 0 : index
    %c0_19 = arith.constant 0 : index
    %22 = vector.load %arg7[%c0_18, %c0_19] : memref<1x128xf32, #tpu.memory_space<vmem>>, vector<1x128xf32>
    %23 = vector.broadcast %22 : vector<1x128xf32> to vector<4x128xf32>
    %24 = arith.addf %21, %23 : vector<4x128xf32>
    %25 = vector.shape_cast %24 : vector<4x128xf32> to vector<1x4x128xf32>
    %c0_20 = arith.constant 0 : index
    %c0_21 = arith.constant 0 : index
    %c0_22 = arith.constant 0 : index
    %26 = vector.load %arg8[%c0_20, %c0_21, %c0_22] : memref<1x4x128xf32, #tpu.memory_space<vmem>>, vector<1x4x128xf32>
    tpu.vector_store %arg8[%c0_20, %c0_21, %c0_22], %25 {strides = array<i32>} : memref<1x4x128xf32, #tpu.memory_space<vmem>>, vector<1x4x128xf32>,
    return
  }
  func.func @transform_0(%arg0: i32) -> (i32, i32, i32) {
    %c0_i32 = arith.constant 0 : i32
    %c0_i32_0 = arith.constant 0 : i32
    %c0_i32_1 = arith.constant 0 : i32
    return %arg0, %c0_i32, %c0_i32_0 : i32, i32, i32
  }
  func.func @transform_1(%arg0: i32) -> (i32, i32) {
    %c0_i32 = arith.constant 0 : i32
    %c0_i32_0 = arith.constant 0 : i32
    %c0_i32_1 = arith.constant 0 : i32
    return %c0_i32, %c0_i32_0 : i32, i32
  }
  func.func @transform_2(%arg0: i32) -> (i32, i32) {
    %c0_i32 = arith.constant 0 : i32
    %c0_i32_0 = arith.constant 0 : i32
    %c0_i32_1 = arith.constant 0 : i32
    return %c0_i32, %c0_i32_0 : i32, i32
  }
  func.func @transform_3(%arg0: i32) -> (i32, i32) {
    %c0_i32 = arith.constant 0 : i32
    %c0_i32_0 = arith.constant 0 : i32
    %c0_i32_1 = arith.constant 0 : i32
    return %c0_i32, %c0_i32_0 : i32, i32
  }
  func.func @transform_4(%arg0: i32) -> (i32, i32) {
    %c0_i32 = arith.constant 0 : i32
    %c0_i32_0 = arith.constant 0 : i32
    %c0_i32_1 = arith.constant 0 : i32
    return %c0_i32, %c0_i32_0 : i32, i32
  }
  func.func @transform_5(%arg0: i32) -> (i32, i32) {
    %c0_i32 = arith.constant 0 : i32
    %c0_i32_0 = arith.constant 0 : i32
    %c0_i32_1 = arith.constant 0 : i32
    return %c0_i32, %c0_i32_0 : i32, i32
  }
  func.func @transform_6(%arg0: i32) -> (i32, i32) {
    %c0_i32 = arith.constant 0 : i32
    %c0_i32_0 = arith.constant 0 : i32
    %c0_i32_1 = arith.constant 0 : i32
    return %c0_i32, %c0_i32_0 : i32, i32
  }
  func.func @transform_7(%arg0: i32) -> (i32, i32, i32) {
    %c0_i32 = arith.constant 0 : i32
    %c0_i32_0 = arith.constant 0 : i32
    %c0_i32_1 = arith.constant 0 : i32
    return %arg0, %c0_i32, %c0_i32_0 : i32, i32, i32
  }
}

</mosaic_0001>

<llo_original>
// kernel: simclr_forward.1
$region0: #{simclr_forward.1}
  #allocation0 [shape = 'u32[]', space=smem, size = 0x4, offset = 0x4, fixed_abs, tag = 'smem constant byte address 0x4 - core index']
  #allocation1 [shape = 'u32[72,128]{1,0:T(1,128)}', space=vmem, size = 0x9000, scoped, tag = 'internal scratch']
  %s0 = inlined_call_operand.vmem [shape: f32[4,256,128], index: 0, kind: input, shape index: {}]
  %s1 = inlined_call_operand.vmem [shape: f32[128,128], index: 1, kind: input, shape index: {}]
  %s2 = inlined_call_operand.vmem [shape: f32[1,128], index: 2, kind: input, shape index: {}]
  %s3 = inlined_call_operand.vmem [shape: f32[128,128], index: 3, kind: input, shape index: {}]
  %s4 = inlined_call_operand.vmem [shape: f32[1,128], index: 4, kind: input, shape index: {}]
  %s5 = inlined_call_operand.vmem [shape: f32[128,128], index: 5, kind: input, shape index: {}]
  %s6 = inlined_call_operand.vmem [shape: f32[1,128], index: 6, kind: input, shape index: {}]
  %s7 = inlined_call_operand.vmem [shape: f32[1,4,128], index: 7, kind: output, shape index: {}]
  %s8 = sld [smem:[#allocation0]]
  $region38: #{simclr_forward.1} parent=0
    _
  %s10 = ssub.s32 1, %s8
  %s11 = scalar_select 0, %s10, %s8
  // Predicated region
  $region2: #{simclr_forward.1} parent=0 // pred_check
    _
  $region3: #{simclr_forward.1} parent=0 // pred_check_branch
    %13 = sbr.rel (0) target = $region5
  $region4: #{simclr_forward.1} parent=0 // pred_region
    _
  $region5: #{simclr_forward.1} parent=0 // pred_fallthru
    _
  // Predicated region
  $region6: #{simclr_forward.1} parent=0 // pred_check
    _
  $region7: #{simclr_forward.1} parent=0 // pred_check_branch
    %15 = sbr.rel (0) target = $region9
  $region8: #{simclr_forward.1} parent=0 // pred_region
    _
  $region9: #{simclr_forward.1} parent=0 // pred_fallthru
    _
  // Predicated region
  $region10: #{simclr_forward.1} parent=0 // pred_check
    _
  $region11: #{simclr_forward.1} parent=0 // pred_check_branch
    %17 = sbr.rel (0) target = $region13
  $region12: #{simclr_forward.1} parent=0 // pred_region
    _
  $region13: #{simclr_forward.1} parent=0 // pred_fallthru
    _
  // Predicated region
  $region14: #{simclr_forward.1} parent=0 // pred_check
    _
  $region15: #{simclr_forward.1} parent=0 // pred_check_branch
    %19 = sbr.rel (0) target = $region17
  $region16: #{simclr_forward.1} parent=0 // pred_region
    _
  $region17: #{simclr_forward.1} parent=0 // pred_fallthru
    _
  // Predicated region
  $region18: #{simclr_forward.1} parent=0 // pred_check
    _
  $region19: #{simclr_forward.1} parent=0 // pred_check_branch
    %21 = sbr.rel (0) target = $region21
  $region20: #{simclr_forward.1} parent=0 // pred_region
    _
  $region21: #{simclr_forward.1} parent=0 // pred_fallthru
    _
  // Predicated region
  $region22: #{simclr_forward.1} parent=0 // pred_check
    _
  $region23: #{simclr_forward.1} parent=0 // pred_check_branch
    %23 = sbr.rel (0) target = $region25
  $region24: #{simclr_forward.1} parent=0 // pred_region
    _
  $region25: #{simclr_forward.1} parent=0 // pred_fallthru
    _
  // Predicated region
  $region26: #{simclr_forward.1} parent=0 // pred_check
    _
  $region27: #{simclr_forward.1} parent=0 // pred_check_branch
    %25 = sbr.rel (0) target = $region29
  $region28: #{simclr_forward.1} parent=0 // pred_region
    _
  $region29: #{simclr_forward.1} parent=0 // pred_fallthru
    _
  %v26 = vld [vmem:[%s0] sm:$0xff]
  %v27 = vld [vmem:[%s0 + $0x8] sm:$0xff]
  %v28 = vld [vmem:[%s0 + $0x10] sm:$0xff]
  %v29 = vld [vmem:[%s0 + $0x18] sm:$0xff]
  %v30 = vld [vmem:[%s0 + $0x20] sm:$0xff]
  %v31 = vld [vmem:[%s0 + $0x28] sm:$0xff]
  %v32 = vld [vmem:[%s0 + $0x30] sm:$0xff]
  %v33 = vld [vmem:[%s0 + $0x38] sm:$0xff]
  %v34 = vld [vmem:[%s0 + $0x40] sm:$0xff]
  %v35 = vld [vmem:[%s0 + $0x48] sm:$0xff]
  %v36 = vld [vmem:[%s0 + $0x50] sm:$0xff]
  %v37 = vld [vmem:[%s0 + $0x58] sm:$0xff]
  %v38 = vld [vmem:[%s0 + $0x60] sm:$0xff]
  %v39 = vld [vmem:[%s0 + $0x68] sm:$0xff]
  %v40 = vld [vmem:[%s0 + $0x70] sm:$0xff]
  %v41 = vld [vmem:[%s0 + $0x78] sm:$0xff]
  %v42 = vld [vmem:[%s0 + $0x80] sm:$0xff]
  %v43 = vld [vmem:[%s0 + $0x88] sm:$0xff]
  %v44 = vld [vmem:[%s0 + $0x90] sm:$0xff]
  %v45 = vld [vmem:[%s0 + $0x98] sm:$0xff]
  %v46 = vld [vmem:[%s0 + $0xa0] sm:$0xff]
  %v47 = vld [vmem:[%s0 + $0xa8] sm:$0xff]
  %v48 = vld [vmem:[%s0 + $0xb0] sm:$0xff]
  %v49 = vld [vmem:[%s0 + $0xb8] sm:$0xff]
  %v50 = vld [vmem:[%s0 + $0xc0] sm:$0xff]
  %v51 = vld [vmem:[%s0 + $0xc8] sm:$0xff]
  %v52 = vld [vmem:[%s0 + $0xd0] sm:$0xff]
  %v53 = vld [vmem:[%s0 + $0xd8] sm:$0xff]
  %v54 = vld [vmem:[%s0 + $0xe0] sm:$0xff]
  %v55 = vld [vmem:[%s0 + $0xe8] sm:$0xff]
  %v56 = vld [vmem:[%s0 + $0xf0] sm:$0xff]
  %v57 = vld [vmem:[%s0 + $0xf8] sm:$0xff]
  %v58 = vld [vmem:[%s0 + $0x100] sm:$0xff]
  %v59 = vld [vmem:[%s0 + $0x108] sm:$0xff]
  %v60 = vld [vmem:[%s0 + $0x110] sm:$0xff]
  %v61 = vld [vmem:[%s0 + $0x118] sm:$0xff]
  %v62 = vld [vmem:[%s0 + $0x120] sm:$0xff]
  %v63 = vld [vmem:[%s0 + $0x128] sm:$0xff]
  %v64 = vld [vmem:[%s0 + $0x130] sm:$0xff]
  %v65 = vld [vmem:[%s0 + $0x138] sm:$0xff]
  %v66 = vld [vmem:[%s0 + $0x140] sm:$0xff]
  %v67 = vld [vmem:[%s0 + $0x148] sm:$0xff]
  %v68 = vld [vmem:[%s0 + $0x150] sm:$0xff]
  %v69 = vld [vmem:[%s0 + $0x158] sm:$0xff]
  %v70 = vld [vmem:[%s0 + $0x160] sm:$0xff]
  %v71 = vld [vmem:[%s0 + $0x168] sm:$0xff]
  %v72 = vld [vmem:[%s0 + $0x170] sm:$0xff]
  %v73 = vld [vmem:[%s0 + $0x178] sm:$0xff]
  %v74 = vld [vmem:[%s0 + $0x180] sm:$0xff]
  %v75 = vld [vmem:[%s0 + $0x188] sm:$0xff]
  %v76 = vld [vmem:[%s0 + $0x190] sm:$0xff]
  %v77 = vld [vmem:[%s0 + $0x198] sm:$0xff]
  %v78 = vld [vmem:[%s0 + $0x1a0] sm:$0xff]
  %v79 = vld [vmem:[%s0 + $0x1a8] sm:$0xff]
  %v80 = vld [vmem:[%s0 + $0x1b0] sm:$0xff]
  %v81 = vld [vmem:[%s0 + $0x1b8] sm:$0xff]
  %v82 = vld [vmem:[%s0 + $0x1c0] sm:$0xff]
  %v83 = vld [vmem:[%s0 + $0x1c8] sm:$0xff]
  %v84 = vld [vmem:[%s0 + $0x1d0] sm:$0xff]
  %v85 = vld [vmem:[%s0 + $0x1d8] sm:$0xff]
  %v86 = vld [vmem:[%s0 + $0x1e0] sm:$0xff]
  %v87 = vld [vmem:[%s0 + $0x1e8] sm:$0xff]
  %v88 = vld [vmem:[%s0 + $0x1f0] sm:$0xff]
  %v89 = vld [vmem:[%s0 + $0x1f8] sm:$0xff]
  %v90 = vld [vmem:[%s0 + $0x200] sm:$0xff]
  %v91 = vld [vmem:[%s0 + $0x208] sm:$0xff]
  %v92 = vld [vmem:[%s0 + $0x210] sm:$0xff]
  %v93 = vld [vmem:[%s0 + $0x218] sm:$0xff]
  %v94 = vld [vmem:[%s0 + $0x220] sm:$0xff]
  %v95 = vld [vmem:[%s0 + $0x228] sm:$0xff]
  %v96 = vld [vmem:[%s0 + $0x230] sm:$0xff]
  %v97 = vld [vmem:[%s0 + $0x238] sm:$0xff]
  %v98 = vld [vmem:[%s0 + $0x240] sm:$0xff]
  %v99 = vld [vmem:[%s0 + $0x248] sm:$0xff]
  %v100 = vld [vmem:[%s0 + $0x250] sm:$0xff]
  %v101 = vld [vmem:[%s0 + $0x258] sm:$0xff]
  %v102 = vld [vmem:[%s0 + $0x260] sm:$0xff]
  %v103 = vld [vmem:[%s0 + $0x268] sm:$0xff]
  %v104 = vld [vmem:[%s0 + $0x270] sm:$0xff]
  %v105 = vld [vmem:[%s0 + $0x278] sm:$0xff]
  %v106 = vld [vmem:[%s0 + $0x280] sm:$0xff]
  %v107 = vld [vmem:[%s0 + $0x288] sm:$0xff]
  %v108 = vld [vmem:[%s0 + $0x290] sm:$0xff]
  %v109 = vld [vmem:[%s0 + $0x298] sm:$0xff]
  %v110 = vld [vmem:[%s0 + $0x2a0] sm:$0xff]
  %v111 = vld [vmem:[%s0 + $0x2a8] sm:$0xff]
  %v112 = vld [vmem:[%s0 + $0x2b0] sm:$0xff]
  %v113 = vld [vmem:[%s0 + $0x2b8] sm:$0xff]
  %v114 = vld [vmem:[%s0 + $0x2c0] sm:$0xff]
  %v115 = vld [vmem:[%s0 + $0x2c8] sm:$0xff]
  %v116 = vld [vmem:[%s0 + $0x2d0] sm:$0xff]
  %v117 = vld [vmem:[%s0 + $0x2d8] sm:$0xff]
  %v118 = vld [vmem:[%s0 + $0x2e0] sm:$0xff]
  %v119 = vld [vmem:[%s0 + $0x2e8] sm:$0xff]
  %v120 = vld [vmem:[%s0 + $0x2f0] sm:$0xff]
  %v121 = vld [vmem:[%s0 + $0x2f8] sm:$0xff]
  %v122 = vld [vmem:[%s0 + $0x300] sm:$0xff]
  %v123 = vld [vmem:[%s0 + $0x308] sm:$0xff]
  %v124 = vld [vmem:[%s0 + $0x310] sm:$0xff]
  %v125 = vld [vmem:[%s0 + $0x318] sm:$0xff]
  %v126 = vld [vmem:[%s0 + $0x320] sm:$0xff]
  %v127 = vld [vmem:[%s0 + $0x328] sm:$0xff]
  %v128 = vld [vmem:[%s0 + $0x330] sm:$0xff]
  %v129 = vld [vmem:[%s0 + $0x338] sm:$0xff]
  %v130 = vld [vmem:[%s0 + $0x340] sm:$0xff]
  %v131 = vld [vmem:[%s0 + $0x348] sm:$0xff]
  %v132 = vld [vmem:[%s0 + $0x350] sm:$0xff]
  %v133 = vld [vmem:[%s0 + $0x358] sm:$0xff]
  %v134 = vld [vmem:[%s0 + $0x360] sm:$0xff]
  %v135 = vld [vmem:[%s0 + $0x368] sm:$0xff]
  %v136 = vld [vmem:[%s0 + $0x370] sm:$0xff]
  %v137 = vld [vmem:[%s0 + $0x378] sm:$0xff]
  %v138 = vld [vmem:[%s0 + $0x380] sm:$0xff]
  %v139 = vld [vmem:[%s0 + $0x388] sm:$0xff]
  %v140 = vld [vmem:[%s0 + $0x390] sm:$0xff]
  %v141 = vld [vmem:[%s0 + $0x398] sm:$0xff]
  %v142 = vld [vmem:[%s0 + $0x3a0] sm:$0xff]
  %v143 = vld [vmem:[%s0 + $0x3a8] sm:$0xff]
  %v144 = vld [vmem:[%s0 + $0x3b0] sm:$0xff]
  %v145 = vld [vmem:[%s0 + $0x3b8] sm:$0xff]
  %v146 = vld [vmem:[%s0 + $0x3c0] sm:$0xff]
  %v147 = vld [vmem:[%s0 + $0x3c8] sm:$0xff]
  %v148 = vld [vmem:[%s0 + $0x3d0] sm:$0xff]
  %v149 = vld [vmem:[%s0 + $0x3d8] sm:$0xff]
  %v150 = vld [vmem:[%s0 + $0x3e0] sm:$0xff]
  %v151 = vld [vmem:[%s0 + $0x3e8] sm:$0xff]
  %v152 = vld [vmem:[%s0 + $0x3f0] sm:$0xff]
  %v153 = vld [vmem:[%s0 + $0x3f8] sm:$0xff]
  %v154 = vld [vmem:[%s1] sm:$0xff]
  %v155 = vld [vmem:[%s1 + $0x8] sm:$0xff]
  %v156 = vld [vmem:[%s1 + $0x10] sm:$0xff]
  %v157 = vld [vmem:[%s1 + $0x18] sm:$0xff]
  %v158 = vld [vmem:[%s1 + $0x20] sm:$0xff]
  %v159 = vld [vmem:[%s1 + $0x28] sm:$0xff]
  %v160 = vld [vmem:[%s1 + $0x30] sm:$0xff]
  %v161 = vld [vmem:[%s1 + $0x38] sm:$0xff]
  %v162 = vld [vmem:[%s1 + $0x40] sm:$0xff]
  %v163 = vld [vmem:[%s1 + $0x48] sm:$0xff]
  %v164 = vld [vmem:[%s1 + $0x50] sm:$0xff]
  %v165 = vld [vmem:[%s1 + $0x58] sm:$0xff]
  %v166 = vld [vmem:[%s1 + $0x60] sm:$0xff]
  %v167 = vld [vmem:[%s1 + $0x68] sm:$0xff]
  %v168 = vld [vmem:[%s1 + $0x70] sm:$0xff]
  %v169 = vld [vmem:[%s1 + $0x78] sm:$0xff]
  %v170 = vld [vmem:[%s2] sm:$0x1]
  %v172 = vperm.slane %v170, 0
  %174 = vmatpush.msra.mxu0 %v169
  %175 = vmatpush.msra.mxu0 %v168
  %176 = vmatpush.msra.mxu0 %v167
  %177 = vmatpush.msra.mxu0 %v166
  %178 = vmatpush.msra.mxu0 %v165
  %179 = vmatpush.msra.mxu0 %v164
  %180 = vmatpush.msra.mxu0 %v163
  %181 = vmatpush.msra.mxu0 %v162
  %182 = vmatpush.msra.mxu0 %v161
  %183 = vmatpush.msra.mxu0 %v160
  %184 = vmatpush.msra.mxu0 %v159
  %185 = vmatpush.msra.mxu0 %v158
  %186 = vmatpush.msra.mxu0 %v157
  %187 = vmatpush.msra.mxu0 %v156
  %188 = vmatpush.msra.mxu0 %v155
  %189 = vmatpush.msra.mxu0 %v154
  %190 = vmatmul.f32.gmra.mxu0 %v26
  %v191 = vpop.f32.mrf.mxu0
  %v192 = vadd.f32 %v172, %v191
  %193 = vmatmul.f32.gmra.mxu0 %v27
  %v194 = vpop.f32.mrf.mxu0
  %v195 = vadd.f32 %v172, %v194
  %196 = vmatmul.f32.gmra.mxu0 %v28
  %v197 = vpop.f32.mrf.mxu0
  %v198 = vadd.f32 %v172, %v197
  %199 = vmatmul.f32.gmra.mxu0 %v29
  %v200 = vpop.f32.mrf.mxu0
  %v201 = vadd.f32 %v172, %v200
  %202 = vmatmul.f32.gmra.mxu0 %v30
  %v203 = vpop.f32.mrf.mxu0
  %v204 = vadd.f32 %v172, %v203
  %205 = vmatmul.f32.gmra.mxu0 %v31
  %v206 = vpop.f32.mrf.mxu0
  %v207 = vadd.f32 %v172, %v206
  %208 = vmatmul.f32.gmra.mxu0 %v32
  %v209 = vpop.f32.mrf.mxu0
  %v210 = vadd.f32 %v172, %v209
  %211 = vmatmul.f32.gmra.mxu0 %v33
  %v212 = vpop.f32.mrf.mxu0
  %v213 = vadd.f32 %v172, %v212
  %214 = vmatmul.f32.gmra.mxu0 %v34
  %v215 = vpop.f32.mrf.mxu0
  %v216 = vadd.f32 %v172, %v215
  %217 = vmatmul.f32.gmra.mxu0 %v35
  %v218 = vpop.f32.mrf.mxu0
  %v219 = vadd.f32 %v172, %v218
  %220 = vmatmul.f32.gmra.mxu0 %v36
  %v221 = vpop.f32.mrf.mxu0
  %v222 = vadd.f32 %v172, %v221
  %223 = vmatmul.f32.gmra.mxu0 %v37
  %v224 = vpop.f32.mrf.mxu0
  %v225 = vadd.f32 %v172, %v224
  %226 = vmatmul.f32.gmra.mxu0 %v38
  %v227 = vpop.f32.mrf.mxu0
  %v228 = vadd.f32 %v172, %v227
  %229 = vmatmul.f32.gmra.mxu0 %v39
  %v230 = vpop.f32.mrf.mxu0
  %v231 = vadd.f32 %v172, %v230
  %232 = vmatmul.f32.gmra.mxu0 %v40
  %v233 = vpop.f32.mrf.mxu0
  %v234 = vadd.f32 %v172, %v233
  %235 = vmatmul.f32.gmra.mxu0 %v41
  %v236 = vpop.f32.mrf.mxu0
  %v237 = vadd.f32 %v172, %v236
  %238 = vmatmul.f32.gmra.mxu0 %v42
  %v239 = vpop.f32.mrf.mxu0
  %v240 = vadd.f32 %v172, %v239
  %241 = vmatmul.f32.gmra.mxu0 %v43
  %v242 = vpop.f32.mrf.mxu0
  %v243 = vadd.f32 %v172, %v242
  %244 = vmatmul.f32.gmra.mxu0 %v44
  %v245 = vpop.f32.mrf.mxu0
  %v246 = vadd.f32 %v172, %v245
  %247 = vmatmul.f32.gmra.mxu0 %v45
  %v248 = vpop.f32.mrf.mxu0
  %v249 = vadd.f32 %v172, %v248
  %250 = vmatmul.f32.gmra.mxu0 %v46
  %v251 = vpop.f32.mrf.mxu0
  %v252 = vadd.f32 %v172, %v251
  %253 = vmatmul.f32.gmra.mxu0 %v47
  %v254 = vpop.f32.mrf.mxu0
  %v255 = vadd.f32 %v172, %v254
  %256 = vmatmul.f32.gmra.mxu0 %v48
  %v257 = vpop.f32.mrf.mxu0
  %v258 = vadd.f32 %v172, %v257
  %259 = vmatmul.f32.gmra.mxu0 %v49
  %v260 = vpop.f32.mrf.mxu0
  %v261 = vadd.f32 %v172, %v260
  %262 = vmatmul.f32.gmra.mxu0 %v50
  %v263 = vpop.f32.mrf.mxu0
  %v264 = vadd.f32 %v172, %v263
  %265 = vmatmul.f32.gmra.mxu0 %v51
  %v266 = vpop.f32.mrf.mxu0
  %v267 = vadd.f32 %v172, %v266
  %268 = vmatmul.f32.gmra.mxu0 %v52
  %v269 = vpop.f32.mrf.mxu0
  %v270 = vadd.f32 %v172, %v269
  %271 = vmatmul.f32.gmra.mxu0 %v53
  %v272 = vpop.f32.mrf.mxu0
  %v273 = vadd.f32 %v172, %v272
  %274 = vmatmul.f32.gmra.mxu0 %v54
  %v275 = vpop.f32.mrf.mxu0
  %v276 = vadd.f32 %v172, %v275
  %277 = vmatmul.f32.gmra.mxu0 %v55
  %v278 = vpop.f32.mrf.mxu0
  %v279 = vadd.f32 %v172, %v278
  %280 = vmatmul.f32.gmra.mxu0 %v56
  %v281 = vpop.f32.mrf.mxu0
  %v282 = vadd.f32 %v172, %v281
  %283 = vmatmul.f32.gmra.mxu0 %v57
  %v284 = vpop.f32.mrf.mxu0
  %v285 = vadd.f32 %v172, %v284
  %286 = vmatmul.f32.gmra.mxu0 %v58
  %v287 = vpop.f32.mrf.mxu0
  %v288 = vadd.f32 %v172, %v287
  %289 = vmatmul.f32.gmra.mxu0 %v59
  %v290 = vpop.f32.mrf.mxu0
  %v291 = vadd.f32 %v172, %v290
  %292 = vmatmul.f32.gmra.mxu0 %v60
  %v293 = vpop.f32.mrf.mxu0
  %v294 = vadd.f32 %v172, %v293
  %295 = vmatmul.f32.gmra.mxu0 %v61
  %v296 = vpop.f32.mrf.mxu0
  %v297 = vadd.f32 %v172, %v296
  %298 = vmatmul.f32.gmra.mxu0 %v62
  %v299 = vpop.f32.mrf.mxu0
  %v300 = vadd.f32 %v172, %v299
  %301 = vmatmul.f32.gmra.mxu0 %v63
  %v302 = vpop.f32.mrf.mxu0
  %v303 = vadd.f32 %v172, %v302
  %304 = vmatmul.f32.gmra.mxu0 %v64
  %v305 = vpop.f32.mrf.mxu0
  %v306 = vadd.f32 %v172, %v305
  %307 = vmatmul.f32.gmra.mxu0 %v65
  %v308 = vpop.f32.mrf.mxu0
  %v309 = vadd.f32 %v172, %v308
  %310 = vmatmul.f32.gmra.mxu0 %v66
  %v311 = vpop.f32.mrf.mxu0
  %v312 = vadd.f32 %v172, %v311
  %313 = vmatmul.f32.gmra.mxu0 %v67
  %v314 = vpop.f32.mrf.mxu0
  %v315 = vadd.f32 %v172, %v314
  %316 = vmatmul.f32.gmra.mxu0 %v68
  %v317 = vpop.f32.mrf.mxu0
  %v318 = vadd.f32 %v172, %v317
  %319 = vmatmul.f32.gmra.mxu0 %v69
  %v320 = vpop.f32.mrf.mxu0
  %v321 = vadd.f32 %v172, %v320
  %322 = vmatmul.f32.gmra.mxu0 %v70
  %v323 = vpop.f32.mrf.mxu0
  %v324 = vadd.f32 %v172, %v323
  %325 = vmatmul.f32.gmra.mxu0 %v71
  %v326 = vpop.f32.mrf.mxu0
  %v327 = vadd.f32 %v172, %v326
  %328 = vmatmul.f32.gmra.mxu0 %v72
  %v329 = vpop.f32.mrf.mxu0
  %v330 = vadd.f32 %v172, %v329
  %331 = vmatmul.f32.gmra.mxu0 %v73
  %v332 = vpop.f32.mrf.mxu0
  %v333 = vadd.f32 %v172, %v332
  %334 = vmatmul.f32.gmra.mxu0 %v74
  %v335 = vpop.f32.mrf.mxu0
  %v336 = vadd.f32 %v172, %v335
  %337 = vmatmul.f32.gmra.mxu0 %v75
  %v338 = vpop.f32.mrf.mxu0
  %v339 = vadd.f32 %v172, %v338
  %340 = vmatmul.f32.gmra.mxu0 %v76
  %v341 = vpop.f32.mrf.mxu0
  %v342 = vadd.f32 %v172, %v341
  %343 = vmatmul.f32.gmra.mxu0 %v77
  %v344 = vpop.f32.mrf.mxu0
  %v345 = vadd.f32 %v172, %v344
  %346 = vmatmul.f32.gmra.mxu0 %v78
  %v347 = vpop.f32.mrf.mxu0
  %v348 = vadd.f32 %v172, %v347
  %349 = vmatmul.f32.gmra.mxu0 %v79
  %v350 = vpop.f32.mrf.mxu0
  %v351 = vadd.f32 %v172, %v350
  %352 = vmatmul.f32.gmra.mxu0 %v80
  %v353 = vpop.f32.mrf.mxu0
  %v354 = vadd.f32 %v172, %v353
  %355 = vmatmul.f32.gmra.mxu0 %v81
  %v356 = vpop.f32.mrf.mxu0
  %v357 = vadd.f32 %v172, %v356
  %358 = vmatmul.f32.gmra.mxu0 %v82
  %v359 = vpop.f32.mrf.mxu0
  %v360 = vadd.f32 %v172, %v359
  %361 = vmatmul.f32.gmra.mxu0 %v83
  %v362 = vpop.f32.mrf.mxu0
  %v363 = vadd.f32 %v172, %v362
  %364 = vmatmul.f32.gmra.mxu0 %v84
  %v365 = vpop.f32.mrf.mxu0
  %v366 = vadd.f32 %v172, %v365
  %367 = vmatmul.f32.gmra.mxu0 %v85
  %v368 = vpop.f32.mrf.mxu0
  %v369 = vadd.f32 %v172, %v368
  %370 = vmatmul.f32.gmra.mxu0 %v86
  %v371 = vpop.f32.mrf.mxu0
  %v372 = vadd.f32 %v172, %v371
  %373 = vmatmul.f32.gmra.mxu0 %v87
  %v374 = vpop.f32.mrf.mxu0
  %v375 = vadd.f32 %v172, %v374
  %376 = vmatmul.f32.gmra.mxu0 %v88
  %v377 = vpop.f32.mrf.mxu0
  %v378 = vadd.f32 %v172, %v377
  %379 = vmatmul.f32.gmra.mxu0 %v89
  %v380 = vpop.f32.mrf.mxu0
  %v381 = vadd.f32 %v172, %v380
  %382 = vmatmul.f32.gmra.mxu0 %v90
  %v383 = vpop.f32.mrf.mxu0
  %v384 = vadd.f32 %v172, %v383
  %385 = vmatmul.f32.gmra.mxu0 %v91
  %v386 = vpop.f32.mrf.mxu0
  %v387 = vadd.f32 %v172, %v386
  %388 = vmatmul.f32.gmra.mxu0 %v92
  %v389 = vpop.f32.mrf.mxu0
  %v390 = vadd.f32 %v172, %v389
  %391 = vmatmul.f32.gmra.mxu0 %v93
  %v392 = vpop.f32.mrf.mxu0
  %v393 = vadd.f32 %v172, %v392
  %394 = vmatmul.f32.gmra.mxu0 %v94
  %v395 = vpop.f32.mrf.mxu0
  %v396 = vadd.f32 %v172, %v395
  %397 = vmatmul.f32.gmra.mxu0 %v95
  %v398 = vpop.f32.mrf.mxu0
  %v399 = vadd.f32 %v172, %v398
  %400 = vmatmul.f32.gmra.mxu0 %v96
  %v401 = vpop.f32.mrf.mxu0
  %v402 = vadd.f32 %v172, %v401
  %403 = vmatmul.f32.gmra.mxu0 %v97
  %v404 = vpop.f32.mrf.mxu0
  %v405 = vadd.f32 %v172, %v404
  %406 = vmatmul.f32.gmra.mxu0 %v98
  %v407 = vpop.f32.mrf.mxu0
  %v408 = vadd.f32 %v172, %v407
  %409 = vmatmul.f32.gmra.mxu0 %v99
  %v410 = vpop.f32.mrf.mxu0
  %v411 = vadd.f32 %v172, %v410
  %412 = vmatmul.f32.gmra.mxu0 %v100
  %v413 = vpop.f32.mrf.mxu0
  %v414 = vadd.f32 %v172, %v413
  %415 = vmatmul.f32.gmra.mxu0 %v101
  %v416 = vpop.f32.mrf.mxu0
  %v417 = vadd.f32 %v172, %v416
  %418 = vmatmul.f32.gmra.mxu0 %v102
  %v419 = vpop.f32.mrf.mxu0
  %v420 = vadd.f32 %v172, %v419
  %421 = vmatmul.f32.gmra.mxu0 %v103
  %v422 = vpop.f32.mrf.mxu0
  %v423 = vadd.f32 %v172, %v422
  %424 = vmatmul.f32.gmra.mxu0 %v104
  %v425 = vpop.f32.mrf.mxu0
  %v426 = vadd.f32 %v172, %v425
  %427 = vmatmul.f32.gmra.mxu0 %v105
  %v428 = vpop.f32.mrf.mxu0
  %v429 = vadd.f32 %v172, %v428
  %430 = vmatmul.f32.gmra.mxu0 %v106
  %v431 = vpop.f32.mrf.mxu0
  %v432 = vadd.f32 %v172, %v431
  %433 = vmatmul.f32.gmra.mxu0 %v107
  %v434 = vpop.f32.mrf.mxu0
  %v435 = vadd.f32 %v172, %v434
  %436 = vmatmul.f32.gmra.mxu0 %v108
  %v437 = vpop.f32.mrf.mxu0
  %v438 = vadd.f32 %v172, %v437
  %439 = vmatmul.f32.gmra.mxu0 %v109
  %v440 = vpop.f32.mrf.mxu0
  %v441 = vadd.f32 %v172, %v440
  %442 = vmatmul.f32.gmra.mxu0 %v110
  %v443 = vpop.f32.mrf.mxu0
  %v444 = vadd.f32 %v172, %v443
  %445 = vmatmul.f32.gmra.mxu0 %v111
  %v446 = vpop.f32.mrf.mxu0
  %v447 = vadd.f32 %v172, %v446
  %448 = vmatmul.f32.gmra.mxu0 %v112
  %v449 = vpop.f32.mrf.mxu0
  %v450 = vadd.f32 %v172, %v449
  %451 = vmatmul.f32.gmra.mxu0 %v113
  %v452 = vpop.f32.mrf.mxu0
  %v453 = vadd.f32 %v172, %v452
  %454 = vmatmul.f32.gmra.mxu0 %v114
  %v455 = vpop.f32.mrf.mxu0
  %v456 = vadd.f32 %v172, %v455
  %457 = vmatmul.f32.gmra.mxu0 %v115
  %v458 = vpop.f32.mrf.mxu0
  %v459 = vadd.f32 %v172, %v458
  %460 = vmatmul.f32.gmra.mxu0 %v116
  %v461 = vpop.f32.mrf.mxu0
  %v462 = vadd.f32 %v172, %v461
  %463 = vmatmul.f32.gmra.mxu0 %v117
  %v464 = vpop.f32.mrf.mxu0
  %v465 = vadd.f32 %v172, %v464
  %466 = vmatmul.f32.gmra.mxu0 %v118
  %v467 = vpop.f32.mrf.mxu0
  %v468 = vadd.f32 %v172, %v467
  %469 = vmatmul.f32.gmra.mxu0 %v119
  %v470 = vpop.f32.mrf.mxu0
  %v471 = vadd.f32 %v172, %v470
  %472 = vmatmul.f32.gmra.mxu0 %v120
  %v473 = vpop.f32.mrf.mxu0
  %v474 = vadd.f32 %v172, %v473
  %475 = vmatmul.f32.gmra.mxu0 %v121
  %v476 = vpop.f32.mrf.mxu0
  %v477 = vadd.f32 %v172, %v476
  %478 = vmatmul.f32.gmra.mxu0 %v122
  %v479 = vpop.f32.mrf.mxu0
  %v480 = vadd.f32 %v172, %v479
  %481 = vmatmul.f32.gmra.mxu0 %v123
  %v482 = vpop.f32.mrf.mxu0
  %v483 = vadd.f32 %v172, %v482
  %484 = vmatmul.f32.gmra.mxu0 %v124
  %v485 = vpop.f32.mrf.mxu0
  %v486 = vadd.f32 %v172, %v485
  %487 = vmatmul.f32.gmra.mxu0 %v125
  %v488 = vpop.f32.mrf.mxu0
  %v489 = vadd.f32 %v172, %v488
  %490 = vmatmul.f32.gmra.mxu0 %v126
  %v491 = vpop.f32.mrf.mxu0
  %v492 = vadd.f32 %v172, %v491
  %493 = vmatmul.f32.gmra.mxu0 %v127
  %v494 = vpop.f32.mrf.mxu0
  %v495 = vadd.f32 %v172, %v494
  %496 = vmatmul.f32.gmra.mxu0 %v128
  %v497 = vpop.f32.mrf.mxu0
  %v498 = vadd.f32 %v172, %v497
  %499 = vmatmul.f32.gmra.mxu0 %v129
  %v500 = vpop.f32.mrf.mxu0
  %v501 = vadd.f32 %v172, %v500
  %502 = vmatmul.f32.gmra.mxu0 %v130
  %v503 = vpop.f32.mrf.mxu0
  %v504 = vadd.f32 %v172, %v503
  %505 = vmatmul.f32.gmra.mxu0 %v131
  %v506 = vpop.f32.mrf.mxu0
  %v507 = vadd.f32 %v172, %v506
  %508 = vmatmul.f32.gmra.mxu0 %v132
  %v509 = vpop.f32.mrf.mxu0
  %v510 = vadd.f32 %v172, %v509
  %511 = vmatmul.f32.gmra.mxu0 %v133
  %v512 = vpop.f32.mrf.mxu0
  %v513 = vadd.f32 %v172, %v512
  %514 = vmatmul.f32.gmra.mxu0 %v134
  %v515 = vpop.f32.mrf.mxu0
  %v516 = vadd.f32 %v172, %v515
  %517 = vmatmul.f32.gmra.mxu0 %v135
  %v518 = vpop.f32.mrf.mxu0
  %v519 = vadd.f32 %v172, %v518
  %520 = vmatmul.f32.gmra.mxu0 %v136
  %v521 = vpop.f32.mrf.mxu0
  %v522 = vadd.f32 %v172, %v521
  %523 = vmatmul.f32.gmra.mxu0 %v137
  %v524 = vpop.f32.mrf.mxu0
  %v525 = vadd.f32 %v172, %v524
  %526 = vmatmul.f32.gmra.mxu0 %v138
  %v527 = vpop.f32.mrf.mxu0
  %v528 = vadd.f32 %v172, %v527
  %529 = vmatmul.f32.gmra.mxu0 %v139
  %v530 = vpop.f32.mrf.mxu0
  %v531 = vadd.f32 %v172, %v530
  %532 = vmatmul.f32.gmra.mxu0 %v140
  %v533 = vpop.f32.mrf.mxu0
  %v534 = vadd.f32 %v172, %v533
  %535 = vmatmul.f32.gmra.mxu0 %v141
  %v536 = vpop.f32.mrf.mxu0
  %v537 = vadd.f32 %v172, %v536
  %538 = vmatmul.f32.gmra.mxu0 %v142
  %v539 = vpop.f32.mrf.mxu0
  %v540 = vadd.f32 %v172, %v539
  %541 = vmatmul.f32.gmra.mxu0 %v143
  %v542 = vpop.f32.mrf.mxu0
  %v543 = vadd.f32 %v172, %v542
  %544 = vmatmul.f32.gmra.mxu0 %v144
  %v545 = vpop.f32.mrf.mxu0
  %v546 = vadd.f32 %v172, %v545
  %547 = vmatmul.f32.gmra.mxu0 %v145
  %v548 = vpop.f32.mrf.mxu0
  %v549 = vadd.f32 %v172, %v548
  %550 = vmatmul.f32.gmra.mxu0 %v146
  %v551 = vpop.f32.mrf.mxu0
  %v552 = vadd.f32 %v172, %v551
  %553 = vmatmul.f32.gmra.mxu0 %v147
  %v554 = vpop.f32.mrf.mxu0
  %v555 = vadd.f32 %v172, %v554
  %556 = vmatmul.f32.gmra.mxu0 %v148
  %v557 = vpop.f32.mrf.mxu0
  %v558 = vadd.f32 %v172, %v557
  %559 = vmatmul.f32.gmra.mxu0 %v149
  %v560 = vpop.f32.mrf.mxu0
  %v561 = vadd.f32 %v172, %v560
  %562 = vmatmul.f32.gmra.mxu0 %v150
  %v563 = vpop.f32.mrf.mxu0
  %v564 = vadd.f32 %v172, %v563
  %565 = vmatmul.f32.gmra.mxu0 %v151
  %v566 = vpop.f32.mrf.mxu0
  %v567 = vadd.f32 %v172, %v566
  %568 = vmatmul.f32.gmra.mxu0 %v152
  %v569 = vpop.f32.mrf.mxu0
  %v570 = vadd.f32 %v172, %v569
  %571 = vmatmul.f32.gmra.mxu0 %v153
  %v572 = vpop.f32.mrf.mxu0
  %v573 = vadd.f32 %v172, %v572
  %574 = vdwg.mxu0
  %v575 = vmax.f32 %v192, 0.0
  %v576 = vmax.f32 %v195, 0.0
  %v577 = vmax.f32 %v198, 0.0
  %v578 = vmax.f32 %v201, 0.0
  %v579 = vmax.f32 %v204, 0.0
  %v580 = vmax.f32 %v207, 0.0
  %v581 = vmax.f32 %v210, 0.0
  %v582 = vmax.f32 %v213, 0.0
  %v583 = vmax.f32 %v216, 0.0
  %v584 = vmax.f32 %v219, 0.0
  %v585 = vmax.f32 %v222, 0.0
  %v586 = vmax.f32 %v225, 0.0
  %v587 = vmax.f32 %v228, 0.0
  %v588 = vmax.f32 %v231, 0.0
  %v589 = vmax.f32 %v234, 0.0
  %v590 = vmax.f32 %v237, 0.0
  %v591 = vmax.f32 %v240, 0.0
  %v592 = vmax.f32 %v243, 0.0
  %v593 = vmax.f32 %v246, 0.0
  %v594 = vmax.f32 %v249, 0.0
  %v595 = vmax.f32 %v252, 0.0
  %v596 = vmax.f32 %v255, 0.0
  %v597 = vmax.f32 %v258, 0.0
  %v598 = vmax.f32 %v261, 0.0
  %v599 = vmax.f32 %v264, 0.0
  %v600 = vmax.f32 %v267, 0.0
  %v601 = vmax.f32 %v270, 0.0
  %v602 = vmax.f32 %v273, 0.0
  %v603 = vmax.f32 %v276, 0.0
  %v604 = vmax.f32 %v279, 0.0
  %v605 = vmax.f32 %v282, 0.0
  %v606 = vmax.f32 %v285, 0.0
  %v607 = vmax.f32 %v288, 0.0
  %v608 = vmax.f32 %v291, 0.0
  %v609 = vmax.f32 %v294, 0.0
  %v610 = vmax.f32 %v297, 0.0
  %v611 = vmax.f32 %v300, 0.0
  %v612 = vmax.f32 %v303, 0.0
  %v613 = vmax.f32 %v306, 0.0
  %v614 = vmax.f32 %v309, 0.0
  %v615 = vmax.f32 %v312, 0.0
  %v616 = vmax.f32 %v315, 0.0
  %v617 = vmax.f32 %v318, 0.0
  %v618 = vmax.f32 %v321, 0.0
  %v619 = vmax.f32 %v324, 0.0
  %v620 = vmax.f32 %v327, 0.0
  %v621 = vmax.f32 %v330, 0.0
  %v622 = vmax.f32 %v333, 0.0
  %v623 = vmax.f32 %v336, 0.0
  %v624 = vmax.f32 %v339, 0.0
  %v625 = vmax.f32 %v342, 0.0
  %v626 = vmax.f32 %v345, 0.0
  %v627 = vmax.f32 %v348, 0.0
  %v628 = vmax.f32 %v351, 0.0
  %v629 = vmax.f32 %v354, 0.0
  %v630 = vmax.f32 %v357, 0.0
  %v631 = vmax.f32 %v360, 0.0
  %v632 = vmax.f32 %v363, 0.0
  %v633 = vmax.f32 %v366, 0.0
  %v634 = vmax.f32 %v369, 0.0
  %v635 = vmax.f32 %v372, 0.0
  %v636 = vmax.f32 %v375, 0.0
  %v637 = vmax.f32 %v378, 0.0
  %v638 = vmax.f32 %v381, 0.0
  %v639 = vmax.f32 %v384, 0.0
  %v640 = vmax.f32 %v387, 0.0
  %v641 = vmax.f32 %v390, 0.0
  %v642 = vmax.f32 %v393, 0.0
  %v643 = vmax.f32 %v396, 0.0
  %v644 = vmax.f32 %v399, 0.0
  %v645 = vmax.f32 %v402, 0.0
  %v646 = vmax.f32 %v405, 0.0
  %v647 = vmax.f32 %v408, 0.0
  %v648 = vmax.f32 %v411, 0.0
  %v649 = vmax.f32 %v414, 0.0
  %v650 = vmax.f32 %v417, 0.0
  %v651 = vmax.f32 %v420, 0.0
  %v652 = vmax.f32 %v423, 0.0
  %v653 = vmax.f32 %v426, 0.0
  %v654 = vmax.f32 %v429, 0.0
  %v655 = vmax.f32 %v432, 0.0
  %v656 = vmax.f32 %v435, 0.0
  %v657 = vmax.f32 %v438, 0.0
  %v658 = vmax.f32 %v441, 0.0
  %v659 = vmax.f32 %v444, 0.0
  %v660 = vmax.f32 %v447, 0.0
  %v661 = vmax.f32 %v450, 0.0
  %v662 = vmax.f32 %v453, 0.0
  %v663 = vmax.f32 %v456, 0.0
  %v664 = vmax.f32 %v459, 0.0
  %v665 = vmax.f32 %v462, 0.0
  %v666 = vmax.f32 %v465, 0.0
  %v667 = vmax.f32 %v468, 0.0
  %v668 = vmax.f32 %v471, 0.0
  %v669 = vmax.f32 %v474, 0.0
  %v670 = vmax.f32 %v477, 0.0
  %v671 = vmax.f32 %v480, 0.0
  %v672 = vmax.f32 %v483, 0.0
  %v673 = vmax.f32 %v486, 0.0
  %v674 = vmax.f32 %v489, 0.0
  %v675 = vmax.f32 %v492, 0.0
  %v676 = vmax.f32 %v495, 0.0
  %v677 = vmax.f32 %v498, 0.0
  %v678 = vmax.f32 %v501, 0.0
  %v679 = vmax.f32 %v504, 0.0
  %v680 = vmax.f32 %v507, 0.0
  %v681 = vmax.f32 %v510, 0.0
  %v682 = vmax.f32 %v513, 0.0
  %v683 = vmax.f32 %v516, 0.0
  %v684 = vmax.f32 %v519, 0.0
  %v685 = vmax.f32 %v522, 0.0
  %v686 = vmax.f32 %v525, 0.0
  %v687 = vmax.f32 %v528, 0.0
  %v688 = vmax.f32 %v531, 0.0
  %v689 = vmax.f32 %v534, 0.0
  %v690 = vmax.f32 %v537, 0.0
  %v691 = vmax.f32 %v540, 0.0
  %v692 = vmax.f32 %v543, 0.0
  %v693 = vmax.f32 %v546, 0.0
  %v694 = vmax.f32 %v549, 0.0
  %v695 = vmax.f32 %v552, 0.0
  %v696 = vmax.f32 %v555, 0.0
  %v697 = vmax.f32 %v558, 0.0
  %v698 = vmax.f32 %v561, 0.0
  %v699 = vmax.f32 %v564, 0.0
  %v700 = vmax.f32 %v567, 0.0
  %v701 = vmax.f32 %v570, 0.0
  %v702 = vmax.f32 %v573, 0.0
  %v703 = vadd.f32 %v575, %v576
  %v704 = vadd.f32 %v703, %v577
  %v705 = vadd.f32 %v704, %v578
  %v706 = vadd.f32 %v705, %v579
  %v707 = vadd.f32 %v706, %v580
  %v708 = vadd.f32 %v707, %v581
  %v709 = vadd.f32 %v708, %v582
  %v710 = vadd.f32 %v709, %v583
  %v711 = vadd.f32 %v710, %v584
  %v712 = vadd.f32 %v711, %v585
  %v713 = vadd.f32 %v712, %v586
  %v714 = vadd.f32 %v713, %v587
  %v715 = vadd.f32 %v714, %v588
  %v716 = vadd.f32 %v715, %v589
  %v717 = vadd.f32 %v716, %v590
  %v718 = vadd.f32 %v717, %v591
  %v719 = vadd.f32 %v718, %v592
  %v720 = vadd.f32 %v719, %v593
  %v721 = vadd.f32 %v720, %v594
  %v722 = vadd.f32 %v721, %v595
  %v723 = vadd.f32 %v722, %v596
  %v724 = vadd.f32 %v723, %v597
  %v725 = vadd.f32 %v724, %v598
  %v726 = vadd.f32 %v725, %v599
  %v727 = vadd.f32 %v726, %v600
  %v728 = vadd.f32 %v727, %v601
  %v729 = vadd.f32 %v728, %v602
  %v730 = vadd.f32 %v729, %v603
  %v731 = vadd.f32 %v730, %v604
  %v732 = vadd.f32 %v731, %v605
  %v733 = vadd.f32 %v732, %v606
  %v734 = vrot.slane %v733, 4
  %v735 = vadd.f32 %v733, %v734
  %v736 = vrot.slane %v735, 2
  %v737 = vadd.f32 %v735, %v736
  %v738 = vrot.slane %v737, 1
  %v739 = vadd.f32 %v737, %v738
  %v740 = vadd.f32 %v607, %v608
  %v741 = vadd.f32 %v740, %v609
  %v742 = vadd.f32 %v741, %v610
  %v743 = vadd.f32 %v742, %v611
  %v744 = vadd.f32 %v743, %v612
  %v745 = vadd.f32 %v744, %v613
  %v746 = vadd.f32 %v745, %v614
  %v747 = vadd.f32 %v746, %v615
  %v748 = vadd.f32 %v747, %v616
  %v749 = vadd.f32 %v748, %v617
  %v750 = vadd.f32 %v749, %v618
  %v751 = vadd.f32 %v750, %v619
  %v752 = vadd.f32 %v751, %v620
  %v753 = vadd.f32 %v752, %v621
  %v754 = vadd.f32 %v753, %v622
  %v755 = vadd.f32 %v754, %v623
  %v756 = vadd.f32 %v755, %v624
  %v757 = vadd.f32 %v756, %v625
  %v758 = vadd.f32 %v757, %v626
  %v759 = vadd.f32 %v758, %v627
  %v760 = vadd.f32 %v759, %v628
  %v761 = vadd.f32 %v760, %v629
  %v762 = vadd.f32 %v761, %v630
  %v763 = vadd.f32 %v762, %v631
  %v764 = vadd.f32 %v763, %v632
  %v765 = vadd.f32 %v764, %v633
  %v766 = vadd.f32 %v765, %v634
  %v767 = vadd.f32 %v766, %v635
  %v768 = vadd.f32 %v767, %v636
  %v769 = vadd.f32 %v768, %v637
  %v770 = vadd.f32 %v769, %v638
  %v771 = vrot.slane %v770, 4
  %v772 = vadd.f32 %v770, %v771
  %v773 = vrot.slane %v772, 2
  %v774 = vadd.f32 %v772, %v773
  %v775 = vrot.slane %v774, 1
  %v776 = vadd.f32 %v774, %v775
  %v777 = vadd.f32 %v639, %v640
  %v778 = vadd.f32 %v777, %v641
  %v779 = vadd.f32 %v778, %v642
  %v780 = vadd.f32 %v779, %v643
  %v781 = vadd.f32 %v780, %v644
  %v782 = vadd.f32 %v781, %v645
  %v783 = vadd.f32 %v782, %v646
  %v784 = vadd.f32 %v783, %v647
  %v785 = vadd.f32 %v784, %v648
  %v786 = vadd.f32 %v785, %v649
  %v787 = vadd.f32 %v786, %v650
  %v788 = vadd.f32 %v787, %v651
  %v789 = vadd.f32 %v788, %v652
  %v790 = vadd.f32 %v789, %v653
  %v791 = vadd.f32 %v790, %v654
  %v792 = vadd.f32 %v791, %v655
  %v793 = vadd.f32 %v792, %v656
  %v794 = vadd.f32 %v793, %v657
  %v795 = vadd.f32 %v794, %v658
  %v796 = vadd.f32 %v795, %v659
  %v797 = vadd.f32 %v796, %v660
  %v798 = vadd.f32 %v797, %v661
  %v799 = vadd.f32 %v798, %v662
  %v800 = vadd.f32 %v799, %v663
  %v801 = vadd.f32 %v800, %v664
  %v802 = vadd.f32 %v801, %v665
  %v803 = vadd.f32 %v802, %v666
  %v804 = vadd.f32 %v803, %v667
  %v805 = vadd.f32 %v804, %v668
  %v806 = vadd.f32 %v805, %v669
  %v807 = vadd.f32 %v806, %v670
  %v808 = vrot.slane %v807, 4
  %v809 = vadd.f32 %v807, %v808
  %v810 = vrot.slane %v809, 2
  %v811 = vadd.f32 %v809, %v810
  %v812 = vrot.slane %v811, 1
  %v813 = vadd.f32 %v811, %v812
  %v814 = vadd.f32 %v671, %v672
  %v815 = vadd.f32 %v814, %v673
  %v816 = vadd.f32 %v815, %v674
  %v817 = vadd.f32 %v816, %v675
  %v818 = vadd.f32 %v817, %v676
  %v819 = vadd.f32 %v818, %v677
  %v820 = vadd.f32 %v819, %v678
  %v821 = vadd.f32 %v820, %v679
  %v822 = vadd.f32 %v821, %v680
  %v823 = vadd.f32 %v822, %v681
  %v824 = vadd.f32 %v823, %v682
  %v825 = vadd.f32 %v824, %v683
  %v826 = vadd.f32 %v825, %v684
  %v827 = vadd.f32 %v826, %v685
  %v828 = vadd.f32 %v827, %v686
  %v829 = vadd.f32 %v828, %v687
  %v830 = vadd.f32 %v829, %v688
  %v831 = vadd.f32 %v830, %v689
  %v832 = vadd.f32 %v831, %v690
  %v833 = vadd.f32 %v832, %v691
  %v834 = vadd.f32 %v833, %v692
  %v835 = vadd.f32 %v834, %v693
  %v836 = vadd.f32 %v835, %v694
  %v837 = vadd.f32 %v836, %v695
  %v838 = vadd.f32 %v837, %v696
  %v839 = vadd.f32 %v838, %v697
  %v840 = vadd.f32 %v839, %v698
  %v841 = vadd.f32 %v840, %v699
  %v842 = vadd.f32 %v841, %v700
  %v843 = vadd.f32 %v842, %v701
  %v844 = vadd.f32 %v843, %v702
  %v845 = vrot.slane %v844, 4
  %v846 = vadd.f32 %v844, %v845
  %v847 = vrot.slane %v846, 2
  %v848 = vadd.f32 %v846, %v847
  %v849 = vrot.slane %v848, 1
  %v850 = vadd.f32 %v848, %v849
  %v851 = vmul.f32 %v739, 0.00390625
  %v852 = vmul.f32 %v776, 0.00390625
  %v853 = vmul.f32 %v813, 0.00390625
  %v854 = vmul.f32 %v850, 0.00390625
  %v855 = vld [vmem:[%s3] sm:$0xff]
  %v856 = vld [vmem:[%s3 + $0x8] sm:$0xff]
  %v857 = vld [vmem:[%s3 + $0x10] sm:$0xff]
  %v858 = vld [vmem:[%s3 + $0x18] sm:$0xff]
  %v859 = vld [vmem:[%s3 + $0x20] sm:$0xff]
  %v860 = vld [vmem:[%s3 + $0x28] sm:$0xff]
  %v861 = vld [vmem:[%s3 + $0x30] sm:$0xff]
  %v862 = vld [vmem:[%s3 + $0x38] sm:$0xff]
  %v863 = vld [vmem:[%s3 + $0x40] sm:$0xff]
  %v864 = vld [vmem:[%s3 + $0x48] sm:$0xff]
  %v865 = vld [vmem:[%s3 + $0x50] sm:$0xff]
  %v866 = vld [vmem:[%s3 + $0x58] sm:$0xff]
  %v867 = vld [vmem:[%s3 + $0x60] sm:$0xff]
  %v868 = vld [vmem:[%s3 + $0x68] sm:$0xff]
  %v869 = vld [vmem:[%s3 + $0x70] sm:$0xff]
  %v870 = vld [vmem:[%s3 + $0x78] sm:$0xff]
  %v871 = vld [vmem:[%s4] sm:$0x1]
  %v873 = vperm.slane %v871, 0
  %vm879 = vcmask 1041409
  %v880 = vsel %vm879, %v852, %v851
  %vm881 = vcmask 1042434
  %v882 = vsel %vm881, %v853, %v880
  %vm883 = vcmask 1043459
  %v884 = vsel %vm883, %v854, %v882
  %886 = vmatpush.msra.mxu0 %v870
  %887 = vmatpush.msra.mxu0 %v869
  %888 = vmatpush.msra.mxu0 %v868
  %889 = vmatpush.msra.mxu0 %v867
  %890 = vmatpush.msra.mxu0 %v866
  %891 = vmatpush.msra.mxu0 %v865
  %892 = vmatpush.msra.mxu0 %v864
  %893 = vmatpush.msra.mxu0 %v863
  %894 = vmatpush.msra.mxu0 %v862
  %895 = vmatpush.msra.mxu0 %v861
  %896 = vmatpush.msra.mxu0 %v860
  %897 = vmatpush.msra.mxu0 %v859
  %898 = vmatpush.msra.mxu0 %v858
  %899 = vmatpush.msra.mxu0 %v857
  %900 = vmatpush.msra.mxu0 %v856
  %901 = vmatpush.msra.mxu0 %v855
  %902 = vmatmul.f32.gmra.mxu0 %v884
  %v903 = vpop.f32.mrf.mxu0
  %v904 = vadd.f32 %v873, %v903
  %905 = vdwg.mxu0
  %v906 = vmax.f32 %v904, 0.0
  %v907 = vld [vmem:[%s5] sm:$0xff]
  %v908 = vld [vmem:[%s5 + $0x8] sm:$0xff]
  %v909 = vld [vmem:[%s5 + $0x10] sm:$0xff]
  %v910 = vld [vmem:[%s5 + $0x18] sm:$0xff]
  %v911 = vld [vmem:[%s5 + $0x20] sm:$0xff]
  %v912 = vld [vmem:[%s5 + $0x28] sm:$0xff]
  %v913 = vld [vmem:[%s5 + $0x30] sm:$0xff]
  %v914 = vld [vmem:[%s5 + $0x38] sm:$0xff]
  %v915 = vld [vmem:[%s5 + $0x40] sm:$0xff]
  %v916 = vld [vmem:[%s5 + $0x48] sm:$0xff]
  %v917 = vld [vmem:[%s5 + $0x50] sm:$0xff]
  %v918 = vld [vmem:[%s5 + $0x58] sm:$0xff]
  %v919 = vld [vmem:[%s5 + $0x60] sm:$0xff]
  %v920 = vld [vmem:[%s5 + $0x68] sm:$0xff]
  %v921 = vld [vmem:[%s5 + $0x70] sm:$0xff]
  %v922 = vld [vmem:[%s5 + $0x78] sm:$0xff]
  %v923 = vld [vmem:[%s6] sm:$0x1]
  %v925 = vperm.slane %v923, 0
  %927 = vmatpush.msra.mxu0 %v922
  %928 = vmatpush.msra.mxu0 %v921
  %929 = vmatpush.msra.mxu0 %v920
  %930 = vmatpush.msra.mxu0 %v919
  %931 = vmatpush.msra.mxu0 %v918
  %932 = vmatpush.msra.mxu0 %v917
  %933 = vmatpush.msra.mxu0 %v916
  %934 = vmatpush.msra.mxu0 %v915
  %935 = vmatpush.msra.mxu0 %v914
  %936 = vmatpush.msra.mxu0 %v913
  %937 = vmatpush.msra.mxu0 %v912
  %938 = vmatpush.msra.mxu0 %v911
  %939 = vmatpush.msra.mxu0 %v910
  %940 = vmatpush.msra.mxu0 %v909
  %941 = vmatpush.msra.mxu0 %v908
  %942 = vmatpush.msra.mxu0 %v907
  %943 = vmatmul.f32.gmra.mxu0 %v906
  %v944 = vpop.f32.mrf.mxu0
  %v945 = vadd.f32 %v925, %v944
  %946 = vdwg.mxu0
  %947 = vst [vmem:[%s7] sm:$0xf] %v945
  // Predicated region
  $region30: #{simclr_forward.1} parent=0 // pred_check
    _
  $region31: #{simclr_forward.1} parent=0 // pred_check_branch
    %949 = sbr.rel (0) target = $region33
  $region32: #{simclr_forward.1} parent=0 // pred_region
    _
  $region33: #{simclr_forward.1} parent=0 // pred_fallthru
    _
  // Predicated region
  $region34: #{simclr_forward.1} parent=0 // pred_check
    _
  $region35: #{simclr_forward.1} parent=0 // pred_check_branch
    %951 = sbr.rel (0) target = $region37
  $region36: #{simclr_forward.1} parent=0 // pred_region
    _
  $region37: #{simclr_forward.1} parent=0 // pred_fallthru
    _

</llo_original>
